<compile_context>
chip_gen: v5e
topology: v5e:2x2
jax: 0.10.0
libtpu: 0.0.40
codegen_flags: <defaults>
</compile_context>

<pallas_src>
import functools

import jax
import jax.numpy as jnp
from jax.experimental import pallas as pl
from jax.experimental.pallas import tpu as pltpu

LANE = 128                    # TPU lane width; feature dims padded to a multiple of this.
TM_MAX = 1024                 # max row tile for the hot loop.
TK_MAX = 2048                 # max K tile for the hot loop.
VMEM_CAP = 40 << 20           # conservative cap (v7x has 64 MiB physical VMEM per TC).
XW_RESIDENT_BYTES = 8 << 20   # keep XW fully VMEM-resident when it fits this budget.


def _round_up(v, m):
    return ((v + m - 1) // m) * m


def _vmem_limit(estimate_bytes):
    return int(min(max(int(estimate_bytes * 1.5), 16 << 20), VMEM_CAP))


def _choose_tiles(n):
    """Pick (n_pad, tm, tk) for the A_hat @ XW hot loop.

    tm <= TM_MAX, keeping >=2 row tiles when N allows (v7x megacore shards the 'parallel' row
    axis across its 2 TensorCores).  tk is the largest multiple of LANE <= TK_MAX dividing n_pad.
    """
    n128 = _round_up(n, LANE)
    tm = TM_MAX
    while tm > LANE and 2 * tm > n128:
        tm //= 2
    n_pad = _round_up(n128, tm)
    tk = min(TK_MAX, n_pad)
    while n_pad % tk:
        tk -= LANE
    return n_pad, tm, tk


# --------------------------------------------------------------------------------------
# Kernel 1: XW = X @ W  (small, O(N * F_in * F_out)), computed once per layer, bf16 in/out.
# --------------------------------------------------------------------------------------
def xw_kernel(x_ref, w_ref, o_ref):
    o_ref[...] = jnp.dot(
        x_ref[...], w_ref[...], preferred_element_type=jnp.float32
    ).astype(o_ref.dtype)


def compute_xw(x_bf16, w_bf16, tm):
    """x_bf16: [N_pad, F_in_pad] bf16, w_bf16: [F_in_pad, F_out_pad] bf16 -> bf16."""
    n_pad, f_in_pad = x_bf16.shape
    f_out_pad = w_bf16.shape[1]
    vmem_est = (2 * tm * f_in_pad * 2            # X tiles (double-buffered, bf16)
                + 2 * f_in_pad * f_out_pad * 2   # W (resident; conservatively x2)
                + 2 * tm * f_out_pad * 2)        # bf16 output tiles
    return pl.pallas_call(
        xw_kernel,
        out_shape=jax.ShapeDtypeStruct((n_pad, f_out_pad), jnp.bfloat16),
        grid=(n_pad // tm,),
        in_specs=[
            pl.BlockSpec((tm, f_in_pad), lambda i: (i, 0)),
            pl.BlockSpec((f_in_pad, f_out_pad), lambda i: (0, 0)),
        ],
        out_specs=pl.BlockSpec((tm, f_out_pad), lambda i: (i, 0)),
        compiler_params=pltpu.CompilerParams(
            dimension_semantics=("parallel",),
            vmem_limit_bytes=_vmem_limit(vmem_est),
        ),
        cost_estimate=pl.CostEstimate(
            flops=2 * n_pad * f_in_pad * f_out_pad,
            transcendentals=0,
            bytes_accessed=(n_pad * f_in_pad + f_in_pad * f_out_pad + n_pad * f_out_pad) * 2,
        ),
    )(x_bf16, w_bf16)


# --------------------------------------------------------------------------------------
# Kernel 2: OUT = ReLU(A_hat @ XW + b) — HBM-bound hot loop, tiled over (row, K).
# --------------------------------------------------------------------------------------
def _acc_step(a_ref, xw_ref, dst_ref, tk, xw_resident):
    """dst_ref (f32) += A_tile @ XW_k_slab  (bf16 MXU inputs, f32 accumulation)."""
    if xw_resident:
        start = pl.multiple_of(pl.program_id(1) * tk, tk)
        xw_blk = xw_ref[pl.ds(start, tk), :]
    else:
        xw_blk = xw_ref[...]
    dst_ref[...] += jnp.dot(a_ref[...], xw_blk, preferred_element_type=jnp.float32)


def aggregate_kernel_f32(a_ref, xw_ref, b_ref, o_ref, *, tk, xw_resident):
    # f32 output: accumulate directly into the K-resident output block (no scratch).
    @pl.when(pl.program_id(1) == 0)
    def _init():
        o_ref[...] = jnp.zeros_like(o_ref)

    _acc_step(a_ref, xw_ref, o_ref, tk, xw_resident)

    @pl.when(pl.program_id(1) == pl.num_programs(1) - 1)
    def _finalize():
        o_ref[...] = jnp.maximum(o_ref[...] + b_ref[...], 0.0)


def aggregate_kernel_bf16(a_ref, xw_ref, b_ref, o_ref, acc_ref, *, tk, xw_resident):
    # bf16 output: f32 VMEM accumulator, bias + ReLU + downcast in the finalize branch.
    @pl.when(pl.program_id(1) == 0)
    def _init():
        acc_ref[...] = jnp.zeros_like(acc_ref)

    _acc_step(a_ref, xw_ref, acc_ref, tk, xw_resident)

    @pl.when(pl.program_id(1) == pl.num_programs(1) - 1)
    def _finalize():
        o_ref[...] = jnp.maximum(acc_ref[...] + b_ref[...], 0.0).astype(o_ref.dtype)


def propagate(a_bf16, xw_bf16, b_pad, tm, tk, out_dtype, xw_resident_bytes=XW_RESIDENT_BYTES):
    """OUT = ReLU(A_hat @ XW + b).

    a_bf16: [N_pad, N_pad] bf16, xw_bf16: [N_pad, F_out_pad] bf16, b_pad: [1, F_out_pad] f32.
    """
    n_pad = a_bf16.shape[0]
    f_out_pad = xw_bf16.shape[1]
    out_dtype = jnp.dtype(out_dtype)
    out_bytes = out_dtype.itemsize

    xw_bytes = n_pad * f_out_pad * 2
    xw_resident = xw_bytes <= xw_resident_bytes
    if xw_resident:
        xw_spec = pl.BlockSpec((n_pad, f_out_pad), lambda i, k: (0, 0))
        xw_vmem = 2 * xw_bytes                      # conservative double-buffer allocation
        xw_hbm = xw_bytes                           # fetched once
    else:
        xw_spec = pl.BlockSpec((tk, f_out_pad), lambda i, k: (k, 0))
        xw_vmem = 2 * tk * f_out_pad * 2
        xw_hbm = (n_pad // tm) * xw_bytes           # re-streamed per row tile

    vmem_est = (2 * tm * tk * 2                     # A_hat tiles (double-buffered, bf16)
                + xw_vmem
                + 2 * f_out_pad * 4                 # bias
                + 2 * tm * f_out_pad * out_bytes)   # output tiles
    if out_dtype == jnp.dtype(jnp.float32):
        kernel = functools.partial(aggregate_kernel_f32, tk=tk, xw_resident=xw_resident)
        scratch_shapes = ()
    else:
        kernel = functools.partial(aggregate_kernel_bf16, tk=tk, xw_resident=xw_resident)
        scratch_shapes = (pltpu.VMEM((tm, f_out_pad), jnp.float32),)
        vmem_est += tm * f_out_pad * 4

    return pl.pallas_call(
        kernel,
        out_shape=jax.ShapeDtypeStruct((n_pad, f_out_pad), out_dtype),
        grid=(n_pad // tm, n_pad // tk),
        in_specs=[
            pl.BlockSpec((tm, tk), lambda i, k: (i, k)),
            xw_spec,
            pl.BlockSpec((1, f_out_pad), lambda i, k: (0, 0)),
        ],
        out_specs=pl.BlockSpec((tm, f_out_pad), lambda i, k: (i, 0)),
        scratch_shapes=scratch_shapes,
        compiler_params=pltpu.CompilerParams(
            dimension_semantics=("parallel", "arbitrary"),
            vmem_limit_bytes=_vmem_limit(vmem_est),
        ),
        cost_estimate=pl.CostEstimate(
            flops=2 * n_pad * n_pad * f_out_pad,
            transcendentals=0,
            bytes_accessed=n_pad * n_pad * 2 + xw_hbm
            + n_pad * f_out_pad * out_bytes + f_out_pad * 4,
        ),
    )(a_bf16, xw_bf16, b_pad)


# --------------------------------------------------------------------------------------
# Plain-JAX glue: normalized adjacency, params, forward wrapper.
# --------------------------------------------------------------------------------------
def normalized_adjacency(edge_index, num_nodes):
    """Dense D^{-1/2}(A + I)D^{-1/2} matching PyG GCNConv aggregation (dst aggregates from src).
    # TODO(synk): duplicate edges collapse to weight 1 here; PyG's gcn_norm sums duplicate weights.
    """
    src, dst = edge_index[0], edge_index[1]
    adj = jnp.zeros((num_nodes, num_nodes), jnp.float32)
    adj = adj.at[dst, src].set(1.0)          # A[dst, src]: message src -> dst
    diag = jnp.arange(num_nodes)
    adj = adj.at[diag, diag].set(1.0)        # add self-loops without double-counting existing ones
    deg = jnp.sum(adj, axis=1)
    d_inv_sqrt = 1.0 / jnp.sqrt(jnp.maximum(deg, 1e-12))
    return adj * d_inv_sqrt[:, None] * d_inv_sqrt[None, :]


def init_encoder_params(key, in_channels, out_channels, k=2):
    """Glorot weights / zero bias, matching the non-skip Encoder layout:
    conv[0]: in -> 2*out, conv[1..k-2]: 2*out -> 2*out, conv[k-1]: 2*out -> out."""
    dims = [in_channels] + [2 * out_channels] * (k - 1) + [out_channels]
    params = []
    for layer in range(k):
        f_in, f_out = dims[layer], dims[layer + 1]
        key, wk = jax.random.split(key)
        scale = jnp.sqrt(6.0 / (f_in + f_out))
        w = jax.random.uniform(wk, (f_in, f_out), jnp.float32, -scale, scale)
        b = jnp.zeros((1, f_out), jnp.float32)
        params.append((w, b))
    return params


def encoder_forward(x, a_hat, params, xw_resident_bytes=XW_RESIDENT_BYTES):
    """Non-skip Encoder forward: h = ReLU(GCNConv_i(h)) for each layer (activation = ReLU)."""
    n, f_in0 = x.shape
    n_pad, tm, tk = _choose_tiles(n)

    # Pad + cast the normalized adjacency (cast first -> no full-size f32 temporary).
    a_pad = jnp.pad(a_hat.astype(jnp.bfloat16), ((0, n_pad - n), (0, n_pad - n)))

    # Node features carried in bf16 end-to-end (the MXU path is bf16 anyway).
    h = jnp.pad(x, ((0, n_pad - n), (0, _round_up(f_in0, LANE) - f_in0))).astype(jnp.bfloat16)

    num_layers = len(params)
    for layer, (w, b) in enumerate(params):
        f_in, f_out = w.shape
        f_in_pad = _round_up(f_in, LANE)
        f_out_pad = _round_up(f_out, LANE)
        w_pad = jnp.pad(w.astype(jnp.bfloat16), ((0, f_in_pad - f_in), (0, f_out_pad - f_out)))
        b_pad = jnp.pad(b, ((0, 0), (0, f_out_pad - f_out)))

        last = layer == num_layers - 1
        xw = compute_xw(h, w_pad, tm)                       # [N_pad, F_out_pad] bf16 (once/layer)
        h = propagate(a_pad, xw, b_pad, tm, tk,
                      out_dtype=jnp.float32 if last else jnp.bfloat16,
                      xw_resident_bytes=xw_resident_bytes)

    f_out_final = params[-1][0].shape[1]
    return h[:n, :f_out_final]


if __name__ == "__main__":
    # Small, deterministic problem: 16 nodes, in_channels=8, out_channels=16, k=2, skip=False.
    key = jax.random.PRNGKey(0)
    num_nodes = 16
    in_channels = 8
    out_channels = 16
    k = 2

    key, xk = jax.random.split(key)
    x = jax.random.normal(xk, (num_nodes, in_channels), jnp.float32)

    # Deterministic graph: undirected cycle (ring + reverse ring).
    idx = jnp.arange(num_nodes)
    src = jnp.concatenate([idx, (idx + 1) % num_nodes])
    dst = jnp.concatenate([(idx + 1) % num_nodes, idx])
    edge_index = jnp.stack([src, dst], axis=0)  # [2, E]

    a_hat = normalized_adjacency(edge_index, num_nodes)
    params = tuple(init_encoder_params(key, in_channels, out_channels, k=k))

    fwd = jax.jit(encoder_forward, static_argnames=("xw_resident_bytes",))
    out = jax.block_until_ready(fwd(x, a_hat, params, xw_resident_bytes=XW_RESIDENT_BYTES))
    assert out.shape == (num_nodes, out_channels)

    # Also exercise the XW-streaming fallback path (budget 0 forces streaming).
    out_stream = jax.block_until_ready(fwd(x, a_hat, params, xw_resident_bytes=0))
    assert jnp.allclose(out, out_stream, atol=1e-5, rtol=1e-5), "resident vs streaming mismatch"

    # Reference 1: same math as the kernels (bf16 MXU inputs / bf16 intermediates, f32 accumulation).
    h_ref = x
    for i, (w, b) in enumerate(params):
        xw_ref = jnp.dot(h_ref.astype(jnp.bfloat16), w.astype(jnp.bfloat16),
                         preferred_element_type=jnp.float32).astype(jnp.bfloat16)
        h_ref = jnp.maximum(jnp.dot(a_hat.astype(jnp.bfloat16), xw_ref,
                                    preferred_element_type=jnp.float32) + b, 0.0)
        if i != len(params) - 1:
            h_ref = h_ref.astype(jnp.bfloat16).astype(jnp.float32)  # intermediate h stored bf16
    assert jnp.allclose(out, h_ref, atol=1e-3, rtol=1e-3), "mismatch vs bf16-matched reference"

    # Reference 2: full-f32 math (module semantics) -> loose tolerance covering bf16 cast error.
    h_f32 = x
    for (w, b) in params:
        h_f32 = jnp.maximum(a_hat @ (h_f32 @ w) + b, 0.0)
    assert jnp.allclose(out, h_f32, atol=2e-2, rtol=2e-2), "mismatch vs f32 reference"

    print("KERNEL_OK")
</pallas_src>

<mosaic_0001>
module attributes {stable_mosaic.version = 11 : i64} {
  func.func @aggregate_kernel_bf16(%arg0: i32, %arg1: i32, %arg2: memref<128x128xbf16, #tpu.memory_space<vmem>>, %arg3: memref<128x128xbf16, #tpu.memory_space<vmem>>, %arg4: memref<1x128xf32, #tpu.memory_space<vmem>>, %arg5: memref<128x128xbf16, #tpu.memory_space<vmem>>, %arg6: memref<128x128xf32, #tpu.memory_space<vmem>>) attributes {dimension_semantics = [#tpu.dimension_semantics<parallel>, #tpu.dimension_semantics<arbitrary>], iteration_bounds = array<i64: 1, 1>, scalar_prefetch = 0 : i64, scratch_operands = 1 : i64, tpu.core_type = #tpu.core_type<tc>, window_params = [{transform_indices = @transform_0, window_bounds = array<i64: 128, 128>}, {pipeline_mode = #tpu.pipeline_mode<synchronous>, transform_indices = @transform_1, window_bounds = array<i64: 128, 128>}, {pipeline_mode = #tpu.pipeline_mode<synchronous>, transform_indices = @transform_2, window_bounds = array<i64: 1, 128>}, {transform_indices = @transform_3, window_bounds = array<i64: 128, 128>}]} {
    %c0_i32 = arith.constant 0 : i32
    %0 = arith.cmpi eq, %arg1, %c0_i32 : i32
    %1 = arith.extui %0 : i1 to i32
    %c0_i32_0 = arith.constant 0 : i32
    %2 = arith.cmpi ne, %1, %c0_i32_0 : i32
    scf.if %2 {
      %cst_9 = arith.constant 0.000000e+00 : f32
      %15 = vector.broadcast %cst_9 : f32 to vector<128x128xf32>
      %c0_10 = arith.constant 0 : index
      %c0_11 = arith.constant 0 : index
      %16 = vector.load %arg6[%c0_10, %c0_11] : memref<128x128xf32, #tpu.memory_space<vmem>>, vector<128x128xf32>
      tpu.vector_store %arg6[%c0_10, %c0_11], %15 {strides = array<i32>} : memref<128x128xf32, #tpu.memory_space<vmem>>, vector<128x128xf32>,
    } else {
    }
    %c128_i32 = arith.constant 128 : i32
    %3 = arith.muli %arg1, %c128_i32 : i32
    %4 = tpu.assume_multiple %3, 128 : i32
    %5 = arith.index_cast %4 : i32 to index
    %c0 = arith.constant 0 : index
    %6 = vector.load %arg3[%5, %c0] : memref<128x128xbf16, #tpu.memory_space<vmem>>, vector<128x128xbf16>
    %c0_1 = arith.constant 0 : index
    %c0_2 = arith.constant 0 : index
    %7 = vector.load %arg6[%c0_1, %c0_2] : memref<128x128xf32, #tpu.memory_space<vmem>>, vector<128x128xf32>
    %c0_3 = arith.constant 0 : index
    %c0_4 = arith.constant 0 : index
    %8 = vector.load %arg2[%c0_3, %c0_4] : memref<128x128xbf16, #tpu.memory_space<vmem>>, vector<128x128xbf16>
    %cst = arith.constant dense<0.000000e+00> : vector<128x128xf32>
    %9 = tpu.matmul %8, %6, %cst {dimension_numbers = #tpu.dot_dimension_numbers<[1], [0], [0], [1], [0, 0, 1, 1], [], []>} : vector<128x128xbf16>, vector<128x128xbf16>, vector<128x128xf32> -> vector<128x128xf32>
    %10 = arith.addf %7, %9 : vector<128x128xf32>
    %c0_5 = arith.constant 0 : index
    %c0_6 = arith.constant 0 : index
    %11 = vector.load %arg6[%c0_5, %c0_6] : memref<128x128xf32, #tpu.memory_space<vmem>>, vector<128x128xf32>
    tpu.vector_store %arg6[%c0_5, %c0_6], %10 {strides = array<i32>} : memref<128x128xf32, #tpu.memory_space<vmem>>, vector<128x128xf32>,
    %c0_i32_7 = arith.constant 0 : i32
    %12 = arith.cmpi eq, %arg1, %c0_i32_7 : i32
    %13 = arith.extui %12 : i1 to i32
    %c0_i32_8 = arith.constant 0 : i32
    %14 = arith.cmpi ne, %13, %c0_i32_8 : i32
    scf.if %14 {
      %c0_9 = arith.constant 0 : index
      %c0_10 = arith.constant 0 : index
      %15 = vector.load %arg6[%c0_9, %c0_10] : memref<128x128xf32, #tpu.memory_space<vmem>>, vector<128x128xf32>
      %c0_11 = arith.constant 0 : index
      %c0_12 = arith.constant 0 : index
      %16 = vector.load %arg4[%c0_11, %c0_12] : memref<1x128xf32, #tpu.memory_space<vmem>>, vector<1x128xf32>
      %17 = vector.broadcast %16 : vector<1x128xf32> to vector<128x128xf32>
      %18 = arith.addf %15, %17 : vector<128x128xf32>
      %cst_13 = arith.constant 0.000000e+00 : f32
      %19 = vector.broadcast %cst_13 : f32 to vector<128x128xf32>
      %20 = arith.maximumf %18, %19 : vector<128x128xf32>
      %21 = arith.truncf %20 : vector<128x128xf32> to vector<128x128xbf16>
      %c0_14 = arith.constant 0 : index
      %c0_15 = arith.constant 0 : index
      %22 = vector.load %arg5[%c0_14, %c0_15] : memref<128x128xbf16, #tpu.memory_space<vmem>>, vector<128x128xbf16>
      tpu.vector_store %arg5[%c0_14, %c0_15], %21 {strides = array<i32>} : memref<128x128xbf16, #tpu.memory_space<vmem>>, vector<128x128xbf16>,
    } else {
    }
    return
  }
  func.func @transform_0(%arg0: i32, %arg1: i32) -> (i32, i32) {
    %c0_i32 = arith.constant 0 : i32
    return %arg0, %arg1 : i32, i32
  }
  func.func @transform_1(%arg0: i32, %arg1: i32) -> (i32, i32) {
    %c0_i32 = arith.constant 0 : i32
    %c0_i32_0 = arith.constant 0 : i32
    %c0_i32_1 = arith.constant 0 : i32
    return %c0_i32, %c0_i32_0 : i32, i32
  }
  func.func @transform_2(%arg0: i32, %arg1: i32) -> (i32, i32) {
    %c0_i32 = arith.constant 0 : i32
    %c0_i32_0 = arith.constant 0 : i32
    %c0_i32_1 = arith.constant 0 : i32
    return %c0_i32, %c0_i32_0 : i32, i32
  }
  func.func @transform_3(%arg0: i32, %arg1: i32) -> (i32, i32) {
    %c0_i32 = arith.constant 0 : i32
    %c0_i32_0 = arith.constant 0 : i32
    return %arg0, %c0_i32 : i32, i32
  }
}

module attributes {stable_mosaic.version = 11 : i64} {
  func.func @xw_kernel(%arg0: i32, %arg1: memref<128x128xbf16, #tpu.memory_space<vmem>>, %arg2: memref<128x128xbf16, #tpu.memory_space<vmem>>, %arg3: memref<128x128xbf16, #tpu.memory_space<vmem>>) attributes {dimension_semantics = [#tpu.dimension_semantics<parallel>], iteration_bounds = array<i64: 1>, scalar_prefetch = 0 : i64, scratch_operands = 0 : i64, tpu.core_type = #tpu.core_type<tc>, window_params = [{transform_indices = @transform_0, window_bounds = array<i64: 128, 128>}, {pipeline_mode = #tpu.pipeline_mode<synchronous>, transform_indices = @transform_1, window_bounds = array<i64: 128, 128>}, {transform_indices = @transform_2, window_bounds = array<i64: 128, 128>}]} {
    %c0 = arith.constant 0 : index
    %c0_0 = arith.constant 0 : index
    %0 = vector.load %arg1[%c0, %c0_0] : memref<128x128xbf16, #tpu.memory_space<vmem>>, vector<128x128xbf16>
    %c0_1 = arith.constant 0 : index
    %c0_2 = arith.constant 0 : index
    %1 = vector.load %arg2[%c0_1, %c0_2] : memref<128x128xbf16, #tpu.memory_space<vmem>>, vector<128x128xbf16>
    %cst = arith.constant dense<0.000000e+00> : vector<128x128xf32>
    %2 = tpu.matmul %0, %1, %cst {dimension_numbers = #tpu.dot_dimension_numbers<[1], [0], [0], [1], [0, 0, 1, 1], [], []>} : vector<128x128xbf16>, vector<128x128xbf16>, vector<128x128xf32> -> vector<128x128xf32>
    %3 = arith.truncf %2 : vector<128x128xf32> to vector<128x128xbf16>
    %c0_3 = arith.constant 0 : index
    %c0_4 = arith.constant 0 : index
    %4 = vector.load %arg3[%c0_3, %c0_4] : memref<128x128xbf16, #tpu.memory_space<vmem>>, vector<128x128xbf16>
    tpu.vector_store %arg3[%c0_3, %c0_4], %3 {strides = array<i32>} : memref<128x128xbf16, #tpu.memory_space<vmem>>, vector<128x128xbf16>,
    return
  }
  func.func @transform_0(%arg0: i32) -> (i32, i32) {
    %c0_i32 = arith.constant 0 : i32
    %c0_i32_0 = arith.constant 0 : i32
    return %arg0, %c0_i32 : i32, i32
  }
  func.func @transform_1(%arg0: i32) -> (i32, i32) {
    %c0_i32 = arith.constant 0 : i32
    %c0_i32_0 = arith.constant 0 : i32
    %c0_i32_1 = arith.constant 0 : i32
    return %c0_i32, %c0_i32_0 : i32, i32
  }
  func.func @transform_2(%arg0: i32) -> (i32, i32) {
    %c0_i32 = arith.constant 0 : i32
    %c0_i32_0 = arith.constant 0 : i32
    return %arg0, %c0_i32 : i32, i32
  }
}

module attributes {stable_mosaic.version = 11 : i64} {
  func.func @aggregate_kernel_f32(%arg0: i32, %arg1: i32, %arg2: memref<128x128xbf16, #tpu.memory_space<vmem>>, %arg3: memref<128x128xbf16, #tpu.memory_space<vmem>>, %arg4: memref<1x128xf32, #tpu.memory_space<vmem>>, %arg5: memref<128x128xf32, #tpu.memory_space<vmem>>) attributes {dimension_semantics = [#tpu.dimension_semantics<parallel>, #tpu.dimension_semantics<arbitrary>], iteration_bounds = array<i64: 1, 1>, scalar_prefetch = 0 : i64, scratch_operands = 0 : i64, tpu.core_type = #tpu.core_type<tc>, window_params = [{transform_indices = @transform_0, window_bounds = array<i64: 128, 128>}, {pipeline_mode = #tpu.pipeline_mode<synchronous>, transform_indices = @transform_1, window_bounds = array<i64: 128, 128>}, {pipeline_mode = #tpu.pipeline_mode<synchronous>, transform_indices = @transform_2, window_bounds = array<i64: 1, 128>}, {transform_indices = @transform_3, window_bounds = array<i64: 128, 128>}]} {
    %c0_i32 = arith.constant 0 : i32
    %0 = arith.cmpi eq, %arg1, %c0_i32 : i32
    %1 = arith.extui %0 : i1 to i32
    %c0_i32_0 = arith.constant 0 : i32
    %2 = arith.cmpi ne, %1, %c0_i32_0 : i32
    scf.if %2 {
      %cst_9 = arith.constant 0.000000e+00 : f32
      %15 = vector.broadcast %cst_9 : f32 to vector<128x128xf32>
      %c0_10 = arith.constant 0 : index
      %c0_11 = arith.constant 0 : index
      %16 = vector.load %arg5[%c0_10, %c0_11] : memref<128x128xf32, #tpu.memory_space<vmem>>, vector<128x128xf32>
      tpu.vector_store %arg5[%c0_10, %c0_11], %15 {strides = array<i32>} : memref<128x128xf32, #tpu.memory_space<vmem>>, vector<128x128xf32>,
    } else {
    }
    %c128_i32 = arith.constant 128 : i32
    %3 = arith.muli %arg1, %c128_i32 : i32
    %4 = tpu.assume_multiple %3, 128 : i32
    %5 = arith.index_cast %4 : i32 to index
    %c0 = arith.constant 0 : index
    %6 = vector.load %arg3[%5, %c0] : memref<128x128xbf16, #tpu.memory_space<vmem>>, vector<128x128xbf16>
    %c0_1 = arith.constant 0 : index
    %c0_2 = arith.constant 0 : index
    %7 = vector.load %arg5[%c0_1, %c0_2] : memref<128x128xf32, #tpu.memory_space<vmem>>, vector<128x128xf32>
    %c0_3 = arith.constant 0 : index
    %c0_4 = arith.constant 0 : index
    %8 = vector.load %arg2[%c0_3, %c0_4] : memref<128x128xbf16, #tpu.memory_space<vmem>>, vector<128x128xbf16>
    %cst = arith.constant dense<0.000000e+00> : vector<128x128xf32>
    %9 = tpu.matmul %8, %6, %cst {dimension_numbers = #tpu.dot_dimension_numbers<[1], [0], [0], [1], [0, 0, 1, 1], [], []>} : vector<128x128xbf16>, vector<128x128xbf16>, vector<128x128xf32> -> vector<128x128xf32>
    %10 = arith.addf %7, %9 : vector<128x128xf32>
    %c0_5 = arith.constant 0 : index
    %c0_6 = arith.constant 0 : index
    %11 = vector.load %arg5[%c0_5, %c0_6] : memref<128x128xf32, #tpu.memory_space<vmem>>, vector<128x128xf32>
    tpu.vector_store %arg5[%c0_5, %c0_6], %10 {strides = array<i32>} : memref<128x128xf32, #tpu.memory_space<vmem>>, vector<128x128xf32>,
    %c0_i32_7 = arith.constant 0 : i32
    %12 = arith.cmpi eq, %arg1, %c0_i32_7 : i32
    %13 = arith.extui %12 : i1 to i32
    %c0_i32_8 = arith.constant 0 : i32
    %14 = arith.cmpi ne, %13, %c0_i32_8 : i32
    scf.if %14 {
      %c0_9 = arith.constant 0 : index
      %c0_10 = arith.constant 0 : index
      %15 = vector.load %arg5[%c0_9, %c0_10] : memref<128x128xf32, #tpu.memory_space<vmem>>, vector<128x128xf32>
      %c0_11 = arith.constant 0 : index
      %c0_12 = arith.constant 0 : index
      %16 = vector.load %arg4[%c0_11, %c0_12] : memref<1x128xf32, #tpu.memory_space<vmem>>, vector<1x128xf32>
      %17 = vector.broadcast %16 : vector<1x128xf32> to vector<128x128xf32>
      %18 = arith.addf %15, %17 : vector<128x128xf32>
      %cst_13 = arith.constant 0.000000e+00 : f32
      %19 = vector.broadcast %cst_13 : f32 to vector<128x128xf32>
      %20 = arith.maximumf %18, %19 : vector<128x128xf32>
      %c0_14 = arith.constant 0 : index
      %c0_15 = arith.constant 0 : index
      %21 = vector.load %arg5[%c0_14, %c0_15] : memref<128x128xf32, #tpu.memory_space<vmem>>, vector<128x128xf32>
      tpu.vector_store %arg5[%c0_14, %c0_15], %20 {strides = array<i32>} : memref<128x128xf32, #tpu.memory_space<vmem>>, vector<128x128xf32>,
    } else {
    }
    return
  }
  func.func @transform_0(%arg0: i32, %arg1: i32) -> (i32, i32) {
    %c0_i32 = arith.constant 0 : i32
    return %arg0, %arg1 : i32, i32
  }
  func.func @transform_1(%arg0: i32, %arg1: i32) -> (i32, i32) {
    %c0_i32 = arith.constant 0 : i32
    %c0_i32_0 = arith.constant 0 : i32
    %c0_i32_1 = arith.constant 0 : i32
    return %c0_i32, %c0_i32_0 : i32, i32
  }
  func.func @transform_2(%arg0: i32, %arg1: i32) -> (i32, i32) {
    %c0_i32 = arith.constant 0 : i32
    %c0_i32_0 = arith.constant 0 : i32
    %c0_i32_1 = arith.constant 0 : i32
    return %c0_i32, %c0_i32_0 : i32, i32
  }
  func.func @transform_3(%arg0: i32, %arg1: i32) -> (i32, i32) {
    %c0_i32 = arith.constant 0 : i32
    %c0_i32_0 = arith.constant 0 : i32
    return %arg0, %c0_i32 : i32, i32
  }
}

</mosaic_0001>

<llo_original>
// kernel: encoder_forward.5
$region0: #{encoder_forward.5}
  #allocation0 [shape = 'u32[]', space=smem, size = 0x4, offset = 0x4, fixed_abs, tag = 'smem constant byte address 0x4 - core index']
  #allocation1 [shape = 'u32[72,128]{1,0:T(1,128)}', space=vmem, size = 0x9000, scoped, tag = 'internal scratch']
  #allocation2 [shape = 'f32[128,128]{1,0:T(8,128)}', space=vmem, size = 0x10000, scoped, tag = 'scratch operand']
  %s0 = inlined_call_operand.vmem [shape: bf16[128,128], index: 0, kind: input, shape index: {}]
  %s1 = inlined_call_operand.vmem [shape: bf16[128,128], index: 1, kind: input, shape index: {}]
  %s2 = inlined_call_operand.vmem [shape: f32[1,128], index: 2, kind: input, shape index: {}]
  %s3 = inlined_call_operand.vmem [shape: bf16[128,128], index: 3, kind: output, shape index: {}]
  %s4 = sld [smem:[#allocation0]]
  $region30: #{encoder_forward.5} parent=0
    _
  %s6 = ssub.s32 1, %s4
  %s7 = scalar_select 0, %s6, %s4
  // Predicated region
  $region2: #{encoder_forward.5} parent=0 // pred_check
    _
  $region3: #{encoder_forward.5} parent=0 // pred_check_branch
    %9 = sbr.rel (0) target = $region5
  $region4: #{encoder_forward.5} parent=0 // pred_region
    _
  $region5: #{encoder_forward.5} parent=0 // pred_fallthru
    _
  // Predicated region
  $region6: #{encoder_forward.5} parent=0 // pred_check
    _
  $region7: #{encoder_forward.5} parent=0 // pred_check_branch
    %11 = sbr.rel (0) target = $region9
  $region8: #{encoder_forward.5} parent=0 // pred_region
    _
  $region9: #{encoder_forward.5} parent=0 // pred_fallthru
    _
  // Predicated region
  $region10: #{encoder_forward.5} parent=0 // pred_check
    _
  $region11: #{encoder_forward.5} parent=0 // pred_check_branch
    %13 = sbr.rel (0) target = $region13
  $region12: #{encoder_forward.5} parent=0 // pred_region
    _
  $region13: #{encoder_forward.5} parent=0 // pred_fallthru
    _
  %p14 = scmp.eq.s32.totalorder 0, 0
  // Predicated region
  $region14: #{encoder_forward.5} parent=0 // pred_check
    %p15 = pneg %p14
  $region15: #{encoder_forward.5} parent=0 // pred_check_branch
    %17 = sbr.rel (%p15) target = $region17
  $region16: #{encoder_forward.5} parent=0 // pred_region
    %18 = vst [vmem:[#allocation2] sm:$0xff] 0.0
    %19 = vst [vmem:[#allocation2 + $0x8] sm:$0xff] 0.0
    %20 = vst [vmem:[#allocation2 + $0x10] sm:$0xff] 0.0
    %21 = vst [vmem:[#allocation2 + $0x18] sm:$0xff] 0.0
    %22 = vst [vmem:[#allocation2 + $0x20] sm:$0xff] 0.0
    %23 = vst [vmem:[#allocation2 + $0x28] sm:$0xff] 0.0
    %24 = vst [vmem:[#allocation2 + $0x30] sm:$0xff] 0.0
    %25 = vst [vmem:[#allocation2 + $0x38] sm:$0xff] 0.0
    %26 = vst [vmem:[#allocation2 + $0x40] sm:$0xff] 0.0
    %27 = vst [vmem:[#allocation2 + $0x48] sm:$0xff] 0.0
    %28 = vst [vmem:[#allocation2 + $0x50] sm:$0xff] 0.0
    %29 = vst [vmem:[#allocation2 + $0x58] sm:$0xff] 0.0
    %30 = vst [vmem:[#allocation2 + $0x60] sm:$0xff] 0.0
    %31 = vst [vmem:[#allocation2 + $0x68] sm:$0xff] 0.0
    %32 = vst [vmem:[#allocation2 + $0x70] sm:$0xff] 0.0
    %33 = vst [vmem:[#allocation2 + $0x78] sm:$0xff] 0.0
  $region17: #{encoder_forward.5} parent=0 // pred_fallthru
    _
  %s34 = smul.u32 0, 128
  %s35 = sshra.s32 %s34, 3
  %s36 = sand.u32 %s34, 7
  %s37 = smul.addr %s35, 4
  %s38 = scalar_lea.vmem %s1, %s37
  %v39 = vld [vmem:[%s38] sm:$0xf]
  %v40 = vld [vmem:[%s38 + $0x4] sm:$0xf]
  %v41 = vld [vmem:[%s38 + $0x8] sm:$0xf]
  %v42 = vld [vmem:[%s38 + $0xc] sm:$0xf]
  %v43 = vld [vmem:[%s38 + $0x10] sm:$0xf]
  %v44 = vld [vmem:[%s38 + $0x14] sm:$0xf]
  %v45 = vld [vmem:[%s38 + $0x18] sm:$0xf]
  %v46 = vld [vmem:[%s38 + $0x1c] sm:$0xf]
  %v47 = vld [vmem:[%s38 + $0x20] sm:$0xf]
  %v48 = vld [vmem:[%s38 + $0x24] sm:$0xf]
  %v49 = vld [vmem:[%s38 + $0x28] sm:$0xf]
  %v50 = vld [vmem:[%s38 + $0x2c] sm:$0xf]
  %v51 = vld [vmem:[%s38 + $0x30] sm:$0xf]
  %v52 = vld [vmem:[%s38 + $0x34] sm:$0xf]
  %v53 = vld [vmem:[%s38 + $0x38] sm:$0xf]
  %v54 = vld [vmem:[%s38 + $0x3c] sm:$0xf]
  %v55 = vld [vmem:[#allocation2] sm:$0xff]
  %v56 = vld [vmem:[#allocation2 + $0x8] sm:$0xff]
  %v57 = vld [vmem:[#allocation2 + $0x10] sm:$0xff]
  %v58 = vld [vmem:[#allocation2 + $0x18] sm:$0xff]
  %v59 = vld [vmem:[#allocation2 + $0x20] sm:$0xff]
  %v60 = vld [vmem:[#allocation2 + $0x28] sm:$0xff]
  %v61 = vld [vmem:[#allocation2 + $0x30] sm:$0xff]
  %v62 = vld [vmem:[#allocation2 + $0x38] sm:$0xff]
  %v63 = vld [vmem:[#allocation2 + $0x40] sm:$0xff]
  %v64 = vld [vmem:[#allocation2 + $0x48] sm:$0xff]
  %v65 = vld [vmem:[#allocation2 + $0x50] sm:$0xff]
  %v66 = vld [vmem:[#allocation2 + $0x58] sm:$0xff]
  %v67 = vld [vmem:[#allocation2 + $0x60] sm:$0xff]
  %v68 = vld [vmem:[#allocation2 + $0x68] sm:$0xff]
  %v69 = vld [vmem:[#allocation2 + $0x70] sm:$0xff]
  %v70 = vld [vmem:[#allocation2 + $0x78] sm:$0xff]
  %v71 = vld [vmem:[%s0] sm:$0xf]
  %v72 = vld [vmem:[%s0 + $0x4] sm:$0xf]
  %v73 = vld [vmem:[%s0 + $0x8] sm:$0xf]
  %v74 = vld [vmem:[%s0 + $0xc] sm:$0xf]
  %v75 = vld [vmem:[%s0 + $0x10] sm:$0xf]
  %v76 = vld [vmem:[%s0 + $0x14] sm:$0xf]
  %v77 = vld [vmem:[%s0 + $0x18] sm:$0xf]
  %v78 = vld [vmem:[%s0 + $0x1c] sm:$0xf]
  %v79 = vld [vmem:[%s0 + $0x20] sm:$0xf]
  %v80 = vld [vmem:[%s0 + $0x24] sm:$0xf]
  %v81 = vld [vmem:[%s0 + $0x28] sm:$0xf]
  %v82 = vld [vmem:[%s0 + $0x2c] sm:$0xf]
  %v83 = vld [vmem:[%s0 + $0x30] sm:$0xf]
  %v84 = vld [vmem:[%s0 + $0x34] sm:$0xf]
  %v85 = vld [vmem:[%s0 + $0x38] sm:$0xf]
  %v86 = vld [vmem:[%s0 + $0x3c] sm:$0xf]
  %v103 = vunpack.c.l.b16 %v71
  %v104 = vunpack.c.l.b16 %v72
  %v105 = vunpack.c.l.b16 %v73
  %v106 = vunpack.c.l.b16 %v74
  %v107 = vunpack.c.l.b16 %v75
  %v108 = vunpack.c.l.b16 %v76
  %v109 = vunpack.c.l.b16 %v77
  %v110 = vunpack.c.l.b16 %v78
  %v111 = vunpack.c.l.b16 %v79
  %v112 = vunpack.c.l.b16 %v80
  %v113 = vunpack.c.l.b16 %v81
  %v114 = vunpack.c.l.b16 %v82
  %v115 = vunpack.c.l.b16 %v83
  %v116 = vunpack.c.l.b16 %v84
  %v117 = vunpack.c.l.b16 %v85
  %v118 = vunpack.c.l.b16 %v86
  %v119 = vpack.c.b16 %v104, %v103
  %v120 = vpack.c.b16 %v106, %v105
  %v121 = vpack.c.b16 %v108, %v107
  %v122 = vpack.c.b16 %v110, %v109
  %v123 = vpack.c.b16 %v112, %v111
  %v124 = vpack.c.b16 %v114, %v113
  %v125 = vpack.c.b16 %v116, %v115
  %v126 = vpack.c.b16 %v118, %v117
  %v151 = vunpack.c.l.b16 %v39
  %v152 = vunpack.c.l.b16 %v40
  %v153 = vunpack.c.l.b16 %v41
  %v154 = vunpack.c.l.b16 %v42
  %v155 = vunpack.c.l.b16 %v43
  %v156 = vunpack.c.l.b16 %v44
  %v157 = vunpack.c.l.b16 %v45
  %v158 = vunpack.c.l.b16 %v46
  %v159 = vunpack.c.l.b16 %v47
  %v160 = vunpack.c.l.b16 %v48
  %v161 = vunpack.c.l.b16 %v49
  %v162 = vunpack.c.l.b16 %v50
  %v163 = vunpack.c.l.b16 %v51
  %v164 = vunpack.c.l.b16 %v52
  %v165 = vunpack.c.l.b16 %v53
  %v166 = vunpack.c.l.b16 %v54
  %v167 = vpack.c.b16 %v152, %v151
  %v168 = vpack.c.b16 %v154, %v153
  %v169 = vpack.c.b16 %v156, %v155
  %v170 = vpack.c.b16 %v158, %v157
  %v171 = vpack.c.b16 %v160, %v159
  %v172 = vpack.c.b16 %v162, %v161
  %v173 = vpack.c.b16 %v164, %v163
  %v174 = vpack.c.b16 %v166, %v165
  %183 = vmatpush.bf16.msra.mxu0 %v174
  %184 = vmatpush.bf16.msra.mxu0 %v173
  %185 = vmatpush.bf16.msra.mxu0 %v172
  %186 = vmatpush.bf16.msra.mxu0 %v171
  %187 = vmatpush.bf16.msra.mxu0 %v170
  %188 = vmatpush.bf16.msra.mxu0 %v169
  %189 = vmatpush.bf16.msra.mxu0 %v168
  %190 = vmatpush.bf16.msra.mxu0 %v167
  %191 = vmatmul.bf16.gmra.mxu0 %v119
  %v192 = vpop.f32.mrf.mxu0
  %v193 = vadd.f32 0.0, %v192
  %v194 = vpop.f32.mrf.mxu0
  %v195 = vadd.f32 0.0, %v194
  %196 = vmatmul.bf16.gmra.mxu0 %v120
  %v197 = vpop.f32.mrf.mxu0
  %v198 = vadd.f32 0.0, %v197
  %v199 = vpop.f32.mrf.mxu0
  %v200 = vadd.f32 0.0, %v199
  %201 = vmatmul.bf16.gmra.mxu0 %v121
  %v202 = vpop.f32.mrf.mxu0
  %v203 = vadd.f32 0.0, %v202
  %v204 = vpop.f32.mrf.mxu0
  %v205 = vadd.f32 0.0, %v204
  %206 = vmatmul.bf16.gmra.mxu0 %v122
  %v207 = vpop.f32.mrf.mxu0
  %v208 = vadd.f32 0.0, %v207
  %v209 = vpop.f32.mrf.mxu0
  %v210 = vadd.f32 0.0, %v209
  %211 = vmatmul.bf16.gmra.mxu0 %v123
  %v212 = vpop.f32.mrf.mxu0
  %v213 = vadd.f32 0.0, %v212
  %v214 = vpop.f32.mrf.mxu0
  %v215 = vadd.f32 0.0, %v214
  %216 = vmatmul.bf16.gmra.mxu0 %v124
  %v217 = vpop.f32.mrf.mxu0
  %v218 = vadd.f32 0.0, %v217
  %v219 = vpop.f32.mrf.mxu0
  %v220 = vadd.f32 0.0, %v219
  %221 = vmatmul.bf16.gmra.mxu0 %v125
  %v222 = vpop.f32.mrf.mxu0
  %v223 = vadd.f32 0.0, %v222
  %v224 = vpop.f32.mrf.mxu0
  %v225 = vadd.f32 0.0, %v224
  %226 = vmatmul.bf16.gmra.mxu0 %v126
  %v227 = vpop.f32.mrf.mxu0
  %v228 = vadd.f32 0.0, %v227
  %v229 = vpop.f32.mrf.mxu0
  %v230 = vadd.f32 0.0, %v229
  %231 = vdwg.mxu0
  %v232 = vadd.f32 %v55, %v193
  %v233 = vadd.f32 %v56, %v195
  %v234 = vadd.f32 %v57, %v198
  %v235 = vadd.f32 %v58, %v200
  %v236 = vadd.f32 %v59, %v203
  %v237 = vadd.f32 %v60, %v205
  %v238 = vadd.f32 %v61, %v208
  %v239 = vadd.f32 %v62, %v210
  %v240 = vadd.f32 %v63, %v213
  %v241 = vadd.f32 %v64, %v215
  %v242 = vadd.f32 %v65, %v218
  %v243 = vadd.f32 %v66, %v220
  %v244 = vadd.f32 %v67, %v223
  %v245 = vadd.f32 %v68, %v225
  %v246 = vadd.f32 %v69, %v228
  %v247 = vadd.f32 %v70, %v230
  %248 = vst [vmem:[#allocation2] sm:$0xff] %v232
  %249 = vst [vmem:[#allocation2 + $0x8] sm:$0xff] %v233
  %250 = vst [vmem:[#allocation2 + $0x10] sm:$0xff] %v234
  %251 = vst [vmem:[#allocation2 + $0x18] sm:$0xff] %v235
  %252 = vst [vmem:[#allocation2 + $0x20] sm:$0xff] %v236
  %253 = vst [vmem:[#allocation2 + $0x28] sm:$0xff] %v237
  %254 = vst [vmem:[#allocation2 + $0x30] sm:$0xff] %v238
  %255 = vst [vmem:[#allocation2 + $0x38] sm:$0xff] %v239
  %256 = vst [vmem:[#allocation2 + $0x40] sm:$0xff] %v240
  %257 = vst [vmem:[#allocation2 + $0x48] sm:$0xff] %v241
  %258 = vst [vmem:[#allocation2 + $0x50] sm:$0xff] %v242
  %259 = vst [vmem:[#allocation2 + $0x58] sm:$0xff] %v243
  %260 = vst [vmem:[#allocation2 + $0x60] sm:$0xff] %v244
  %261 = vst [vmem:[#allocation2 + $0x68] sm:$0xff] %v245
  %262 = vst [vmem:[#allocation2 + $0x70] sm:$0xff] %v246
  %263 = vst [vmem:[#allocation2 + $0x78] sm:$0xff] %v247
  // Predicated region
  $region18: #{encoder_forward.5} parent=0 // pred_check
    %p264 = pneg %p14
  $region19: #{encoder_forward.5} parent=0 // pred_check_branch
    %266 = sbr.rel (%p264) target = $region21
  $region20: #{encoder_forward.5} parent=0 // pred_region
    %v267 = vld [vmem:[#allocation2] sm:$0xff]
    %v268 = vld [vmem:[#allocation2 + $0x8] sm:$0xff]
    %v269 = vld [vmem:[#allocation2 + $0x10] sm:$0xff]
    %v270 = vld [vmem:[#allocation2 + $0x18] sm:$0xff]
    %v271 = vld [vmem:[#allocation2 + $0x20] sm:$0xff]
    %v272 = vld [vmem:[#allocation2 + $0x28] sm:$0xff]
    %v273 = vld [vmem:[#allocation2 + $0x30] sm:$0xff]
    %v274 = vld [vmem:[#allocation2 + $0x38] sm:$0xff]
    %v275 = vld [vmem:[#allocation2 + $0x40] sm:$0xff]
    %v276 = vld [vmem:[#allocation2 + $0x48] sm:$0xff]
    %v277 = vld [vmem:[#allocation2 + $0x50] sm:$0xff]
    %v278 = vld [vmem:[#allocation2 + $0x58] sm:$0xff]
    %v279 = vld [vmem:[#allocation2 + $0x60] sm:$0xff]
    %v280 = vld [vmem:[#allocation2 + $0x68] sm:$0xff]
    %v281 = vld [vmem:[#allocation2 + $0x70] sm:$0xff]
    %v282 = vld [vmem:[#allocation2 + $0x78] sm:$0xff]
    %v283 = vld [vmem:[%s2] sm:$0x1]
    %v285 = vperm.slane %v283, 0
    %v287 = vadd.f32 %v267, %v285
    %v288 = vadd.f32 %v268, %v285
    %v289 = vadd.f32 %v269, %v285
    %v290 = vadd.f32 %v270, %v285
    %v291 = vadd.f32 %v271, %v285
    %v292 = vadd.f32 %v272, %v285
    %v293 = vadd.f32 %v273, %v285
    %v294 = vadd.f32 %v274, %v285
    %v295 = vadd.f32 %v275, %v285
    %v296 = vadd.f32 %v276, %v285
    %v297 = vadd.f32 %v277, %v285
    %v298 = vadd.f32 %v278, %v285
    %v299 = vadd.f32 %v279, %v285
    %v300 = vadd.f32 %v280, %v285
    %v301 = vadd.f32 %v281, %v285
    %v302 = vadd.f32 %v282, %v285
    %v303 = vmax.f32 %v287, 0.0
    %v304 = vmax.f32 %v288, 0.0
    %v305 = vmax.f32 %v289, 0.0
    %v306 = vmax.f32 %v290, 0.0
    %v307 = vmax.f32 %v291, 0.0
    %v308 = vmax.f32 %v292, 0.0
    %v309 = vmax.f32 %v293, 0.0
    %v310 = vmax.f32 %v294, 0.0
    %v311 = vmax.f32 %v295, 0.0
    %v312 = vmax.f32 %v296, 0.0
    %v313 = vmax.f32 %v297, 0.0
    %v314 = vmax.f32 %v298, 0.0
    %v315 = vmax.f32 %v299, 0.0
    %v316 = vmax.f32 %v300, 0.0
    %v317 = vmax.f32 %v301, 0.0
    %v318 = vmax.f32 %v302, 0.0
    %v319 = vpack.c.bf16 %v303, %v303
    %v320 = vpack.c.bf16 %v304, %v304
    %v321 = vpack.c.bf16 %v305, %v305
    %v322 = vpack.c.bf16 %v306, %v306
    %v323 = vpack.c.bf16 %v307, %v307
    %v324 = vpack.c.bf16 %v308, %v308
    %v325 = vpack.c.bf16 %v309, %v309
    %v326 = vpack.c.bf16 %v310, %v310
    %v327 = vpack.c.bf16 %v311, %v311
    %v328 = vpack.c.bf16 %v312, %v312
    %v329 = vpack.c.bf16 %v313, %v313
    %v330 = vpack.c.bf16 %v314, %v314
    %v331 = vpack.c.bf16 %v315, %v315
    %v332 = vpack.c.bf16 %v316, %v316
    %v333 = vpack.c.bf16 %v317, %v317
    %v334 = vpack.c.bf16 %v318, %v318
    %335 = vst [vmem:[%s3] sm:$0xf] %v319
    %336 = vst [vmem:[%s3 + $0x4] sm:$0xf] %v320
    %337 = vst [vmem:[%s3 + $0x8] sm:$0xf] %v321
    %338 = vst [vmem:[%s3 + $0xc] sm:$0xf] %v322
    %339 = vst [vmem:[%s3 + $0x10] sm:$0xf] %v323
    %340 = vst [vmem:[%s3 + $0x14] sm:$0xf] %v324
    %341 = vst [vmem:[%s3 + $0x18] sm:$0xf] %v325
    %342 = vst [vmem:[%s3 + $0x1c] sm:$0xf] %v326
    %343 = vst [vmem:[%s3 + $0x20] sm:$0xf] %v327
    %344 = vst [vmem:[%s3 + $0x24] sm:$0xf] %v328
    %345 = vst [vmem:[%s3 + $0x28] sm:$0xf] %v329
    %346 = vst [vmem:[%s3 + $0x2c] sm:$0xf] %v330
    %347 = vst [vmem:[%s3 + $0x30] sm:$0xf] %v331
    %348 = vst [vmem:[%s3 + $0x34] sm:$0xf] %v332
    %349 = vst [vmem:[%s3 + $0x38] sm:$0xf] %v333
    %350 = vst [vmem:[%s3 + $0x3c] sm:$0xf] %v334
  $region21: #{encoder_forward.5} parent=0 // pred_fallthru
    _
  // Predicated region
  $region22: #{encoder_forward.5} parent=0 // pred_check
    _
  $region23: #{encoder_forward.5} parent=0 // pred_check_branch
    %352 = sbr.rel (0) target = $region25
  $region24: #{encoder_forward.5} parent=0 // pred_region
    _
  $region25: #{encoder_forward.5} parent=0 // pred_fallthru
    _
  // Predicated region
  $region26: #{encoder_forward.5} parent=0 // pred_check
    _
  $region27: #{encoder_forward.5} parent=0 // pred_check_branch
    %354 = sbr.rel (0) target = $region29
  $region28: #{encoder_forward.5} parent=0 // pred_region
    _
  $region29: #{encoder_forward.5} parent=0 // pred_fallthru
    _

// kernel: encoder_forward.4
$region0: #{encoder_forward.4}
  #allocation0 [shape = 'u32[]', space=smem, size = 0x4, offset = 0x4, fixed_abs, tag = 'smem constant byte address 0x4 - core index']
  #allocation1 [shape = 'u32[72,128]{1,0:T(1,128)}', space=vmem, size = 0x9000, scoped, tag = 'internal scratch']
  %s0 = inlined_call_operand.vmem [shape: bf16[128,128], index: 0, kind: input, shape index: {}]
  %s1 = inlined_call_operand.vmem [shape: bf16[128,128], index: 1, kind: input, shape index: {}]
  %s2 = inlined_call_operand.vmem [shape: bf16[128,128], index: 2, kind: output, shape index: {}]
  %s3 = sld [smem:[#allocation0]]
  $region18: #{encoder_forward.4} parent=0
    _
  %s5 = ssub.s32 1, %s3
  %s6 = scalar_select 0, %s5, %s3
  // Predicated region
  $region2: #{encoder_forward.4} parent=0 // pred_check
    _
  $region3: #{encoder_forward.4} parent=0 // pred_check_branch
    %8 = sbr.rel (0) target = $region5
  $region4: #{encoder_forward.4} parent=0 // pred_region
    _
  $region5: #{encoder_forward.4} parent=0 // pred_fallthru
    _
  // Predicated region
  $region6: #{encoder_forward.4} parent=0 // pred_check
    _
  $region7: #{encoder_forward.4} parent=0 // pred_check_branch
    %10 = sbr.rel (0) target = $region9
  $region8: #{encoder_forward.4} parent=0 // pred_region
    _
  $region9: #{encoder_forward.4} parent=0 // pred_fallthru
    _
  %v11 = vld [vmem:[%s0] sm:$0xf]
  %v12 = vld [vmem:[%s0 + $0x4] sm:$0xf]
  %v13 = vld [vmem:[%s0 + $0x8] sm:$0xf]
  %v14 = vld [vmem:[%s0 + $0xc] sm:$0xf]
  %v15 = vld [vmem:[%s0 + $0x10] sm:$0xf]
  %v16 = vld [vmem:[%s0 + $0x14] sm:$0xf]
  %v17 = vld [vmem:[%s0 + $0x18] sm:$0xf]
  %v18 = vld [vmem:[%s0 + $0x1c] sm:$0xf]
  %v19 = vld [vmem:[%s0 + $0x20] sm:$0xf]
  %v20 = vld [vmem:[%s0 + $0x24] sm:$0xf]
  %v21 = vld [vmem:[%s0 + $0x28] sm:$0xf]
  %v22 = vld [vmem:[%s0 + $0x2c] sm:$0xf]
  %v23 = vld [vmem:[%s0 + $0x30] sm:$0xf]
  %v24 = vld [vmem:[%s0 + $0x34] sm:$0xf]
  %v25 = vld [vmem:[%s0 + $0x38] sm:$0xf]
  %v26 = vld [vmem:[%s0 + $0x3c] sm:$0xf]
  %v27 = vld [vmem:[%s1] sm:$0xf]
  %v28 = vld [vmem:[%s1 + $0x4] sm:$0xf]
  %v29 = vld [vmem:[%s1 + $0x8] sm:$0xf]
  %v30 = vld [vmem:[%s1 + $0xc] sm:$0xf]
  %v31 = vld [vmem:[%s1 + $0x10] sm:$0xf]
  %v32 = vld [vmem:[%s1 + $0x14] sm:$0xf]
  %v33 = vld [vmem:[%s1 + $0x18] sm:$0xf]
  %v34 = vld [vmem:[%s1 + $0x1c] sm:$0xf]
  %v35 = vld [vmem:[%s1 + $0x20] sm:$0xf]
  %v36 = vld [vmem:[%s1 + $0x24] sm:$0xf]
  %v37 = vld [vmem:[%s1 + $0x28] sm:$0xf]
  %v38 = vld [vmem:[%s1 + $0x2c] sm:$0xf]
  %v39 = vld [vmem:[%s1 + $0x30] sm:$0xf]
  %v40 = vld [vmem:[%s1 + $0x34] sm:$0xf]
  %v41 = vld [vmem:[%s1 + $0x38] sm:$0xf]
  %v42 = vld [vmem:[%s1 + $0x3c] sm:$0xf]
  %v59 = vunpack.c.l.b16 %v11
  %v60 = vunpack.c.l.b16 %v12
  %v61 = vunpack.c.l.b16 %v13
  %v62 = vunpack.c.l.b16 %v14
  %v63 = vunpack.c.l.b16 %v15
  %v64 = vunpack.c.l.b16 %v16
  %v65 = vunpack.c.l.b16 %v17
  %v66 = vunpack.c.l.b16 %v18
  %v67 = vunpack.c.l.b16 %v19
  %v68 = vunpack.c.l.b16 %v20
  %v69 = vunpack.c.l.b16 %v21
  %v70 = vunpack.c.l.b16 %v22
  %v71 = vunpack.c.l.b16 %v23
  %v72 = vunpack.c.l.b16 %v24
  %v73 = vunpack.c.l.b16 %v25
  %v74 = vunpack.c.l.b16 %v26
  %v75 = vpack.c.b16 %v60, %v59
  %v76 = vpack.c.b16 %v62, %v61
  %v77 = vpack.c.b16 %v64, %v63
  %v78 = vpack.c.b16 %v66, %v65
  %v79 = vpack.c.b16 %v68, %v67
  %v80 = vpack.c.b16 %v70, %v69
  %v81 = vpack.c.b16 %v72, %v71
  %v82 = vpack.c.b16 %v74, %v73
  %v107 = vunpack.c.l.b16 %v27
  %v108 = vunpack.c.l.b16 %v28
  %v109 = vunpack.c.l.b16 %v29
  %v110 = vunpack.c.l.b16 %v30
  %v111 = vunpack.c.l.b16 %v31
  %v112 = vunpack.c.l.b16 %v32
  %v113 = vunpack.c.l.b16 %v33
  %v114 = vunpack.c.l.b16 %v34
  %v115 = vunpack.c.l.b16 %v35
  %v116 = vunpack.c.l.b16 %v36
  %v117 = vunpack.c.l.b16 %v37
  %v118 = vunpack.c.l.b16 %v38
  %v119 = vunpack.c.l.b16 %v39
  %v120 = vunpack.c.l.b16 %v40
  %v121 = vunpack.c.l.b16 %v41
  %v122 = vunpack.c.l.b16 %v42
  %v123 = vpack.c.b16 %v108, %v107
  %v124 = vpack.c.b16 %v110, %v109
  %v125 = vpack.c.b16 %v112, %v111
  %v126 = vpack.c.b16 %v114, %v113
  %v127 = vpack.c.b16 %v116, %v115
  %v128 = vpack.c.b16 %v118, %v117
  %v129 = vpack.c.b16 %v120, %v119
  %v130 = vpack.c.b16 %v122, %v121
  %139 = vmatpush.bf16.msra.mxu0 %v130
  %140 = vmatpush.bf16.msra.mxu0 %v129
  %141 = vmatpush.bf16.msra.mxu0 %v128
  %142 = vmatpush.bf16.msra.mxu0 %v127
  %143 = vmatpush.bf16.msra.mxu0 %v126
  %144 = vmatpush.bf16.msra.mxu0 %v125
  %145 = vmatpush.bf16.msra.mxu0 %v124
  %146 = vmatpush.bf16.msra.mxu0 %v123
  %147 = vmatmul.bf16.gmra.mxu0 %v75
  %v148 = vpop.f32.mrf.mxu0
  %v149 = vadd.f32 0.0, %v148
  %v150 = vpop.f32.mrf.mxu0
  %v151 = vadd.f32 0.0, %v150
  %152 = vmatmul.bf16.gmra.mxu0 %v76
  %v153 = vpop.f32.mrf.mxu0
  %v154 = vadd.f32 0.0, %v153
  %v155 = vpop.f32.mrf.mxu0
  %v156 = vadd.f32 0.0, %v155
  %157 = vmatmul.bf16.gmra.mxu0 %v77
  %v158 = vpop.f32.mrf.mxu0
  %v159 = vadd.f32 0.0, %v158
  %v160 = vpop.f32.mrf.mxu0
  %v161 = vadd.f32 0.0, %v160
  %162 = vmatmul.bf16.gmra.mxu0 %v78
  %v163 = vpop.f32.mrf.mxu0
  %v164 = vadd.f32 0.0, %v163
  %v165 = vpop.f32.mrf.mxu0
  %v166 = vadd.f32 0.0, %v165
  %167 = vmatmul.bf16.gmra.mxu0 %v79
  %v168 = vpop.f32.mrf.mxu0
  %v169 = vadd.f32 0.0, %v168
  %v170 = vpop.f32.mrf.mxu0
  %v171 = vadd.f32 0.0, %v170
  %172 = vmatmul.bf16.gmra.mxu0 %v80
  %v173 = vpop.f32.mrf.mxu0
  %v174 = vadd.f32 0.0, %v173
  %v175 = vpop.f32.mrf.mxu0
  %v176 = vadd.f32 0.0, %v175
  %177 = vmatmul.bf16.gmra.mxu0 %v81
  %v178 = vpop.f32.mrf.mxu0
  %v179 = vadd.f32 0.0, %v178
  %v180 = vpop.f32.mrf.mxu0
  %v181 = vadd.f32 0.0, %v180
  %182 = vmatmul.bf16.gmra.mxu0 %v82
  %v183 = vpop.f32.mrf.mxu0
  %v184 = vadd.f32 0.0, %v183
  %v185 = vpop.f32.mrf.mxu0
  %v186 = vadd.f32 0.0, %v185
  %187 = vdwg.mxu0
  %v188 = vpack.c.bf16 %v149, %v149
  %v189 = vpack.c.bf16 %v151, %v151
  %v190 = vpack.c.bf16 %v154, %v154
  %v191 = vpack.c.bf16 %v156, %v156
  %v192 = vpack.c.bf16 %v159, %v159
  %v193 = vpack.c.bf16 %v161, %v161
  %v194 = vpack.c.bf16 %v164, %v164
  %v195 = vpack.c.bf16 %v166, %v166
  %v196 = vpack.c.bf16 %v169, %v169
  %v197 = vpack.c.bf16 %v171, %v171
  %v198 = vpack.c.bf16 %v174, %v174
  %v199 = vpack.c.bf16 %v176, %v176
  %v200 = vpack.c.bf16 %v179, %v179
  %v201 = vpack.c.bf16 %v181, %v181
  %v202 = vpack.c.bf16 %v184, %v184
  %v203 = vpack.c.bf16 %v186, %v186
  %204 = vst [vmem:[%s2] sm:$0xf] %v188
  %205 = vst [vmem:[%s2 + $0x4] sm:$0xf] %v189
  %206 = vst [vmem:[%s2 + $0x8] sm:$0xf] %v190
  %207 = vst [vmem:[%s2 + $0xc] sm:$0xf] %v191
  %208 = vst [vmem:[%s2 + $0x10] sm:$0xf] %v192
  %209 = vst [vmem:[%s2 + $0x14] sm:$0xf] %v193
  %210 = vst [vmem:[%s2 + $0x18] sm:$0xf] %v194
  %211 = vst [vmem:[%s2 + $0x1c] sm:$0xf] %v195
  %212 = vst [vmem:[%s2 + $0x20] sm:$0xf] %v196
  %213 = vst [vmem:[%s2 + $0x24] sm:$0xf] %v197
  %214 = vst [vmem:[%s2 + $0x28] sm:$0xf] %v198
  %215 = vst [vmem:[%s2 + $0x2c] sm:$0xf] %v199
  %216 = vst [vmem:[%s2 + $0x30] sm:$0xf] %v200
  %217 = vst [vmem:[%s2 + $0x34] sm:$0xf] %v201
  %218 = vst [vmem:[%s2 + $0x38] sm:$0xf] %v202
  %219 = vst [vmem:[%s2 + $0x3c] sm:$0xf] %v203
  // Predicated region
  $region10: #{encoder_forward.4} parent=0 // pred_check
    _
  $region11: #{encoder_forward.4} parent=0 // pred_check_branch
    %221 = sbr.rel (0) target = $region13
  $region12: #{encoder_forward.4} parent=0 // pred_region
    _
  $region13: #{encoder_forward.4} parent=0 // pred_fallthru
    _
  // Predicated region
  $region14: #{encoder_forward.4} parent=0 // pred_check
    _
  $region15: #{encoder_forward.4} parent=0 // pred_check_branch
    %223 = sbr.rel (0) target = $region17
  $region16: #{encoder_forward.4} parent=0 // pred_region
    _
  $region17: #{encoder_forward.4} parent=0 // pred_fallthru
    _

// kernel: encoder_forward.7
$region0: #{encoder_forward.7}
  #allocation0 [shape = 'u32[]', space=smem, size = 0x4, offset = 0x4, fixed_abs, tag = 'smem constant byte address 0x4 - core index']
  #allocation1 [shape = 'u32[72,128]{1,0:T(1,128)}', space=vmem, size = 0x9000, scoped, tag = 'internal scratch']
  %s0 = inlined_call_operand.vmem [shape: bf16[128,128], index: 0, kind: input, shape index: {}]
  %s1 = inlined_call_operand.vmem [shape: bf16[128,128], index: 1, kind: input, shape index: {}]
  %s2 = inlined_call_operand.vmem [shape: f32[1,128], index: 2, kind: input, shape index: {}]
  %s3 = inlined_call_operand.vmem [shape: f32[128,128], index: 3, kind: output, shape index: {}]
  %s4 = sld [smem:[#allocation0]]
  $region30: #{encoder_forward.7} parent=0
    _
  %s6 = ssub.s32 1, %s4
  %s7 = scalar_select 0, %s6, %s4
  // Predicated region
  $region2: #{encoder_forward.7} parent=0 // pred_check
    _
  $region3: #{encoder_forward.7} parent=0 // pred_check_branch
    %9 = sbr.rel (0) target = $region5
  $region4: #{encoder_forward.7} parent=0 // pred_region
    _
  $region5: #{encoder_forward.7} parent=0 // pred_fallthru
    _
  // Predicated region
  $region6: #{encoder_forward.7} parent=0 // pred_check
    _
  $region7: #{encoder_forward.7} parent=0 // pred_check_branch
    %11 = sbr.rel (0) target = $region9
  $region8: #{encoder_forward.7} parent=0 // pred_region
    _
  $region9: #{encoder_forward.7} parent=0 // pred_fallthru
    _
  // Predicated region
  $region10: #{encoder_forward.7} parent=0 // pred_check
    _
  $region11: #{encoder_forward.7} parent=0 // pred_check_branch
    %13 = sbr.rel (0) target = $region13
  $region12: #{encoder_forward.7} parent=0 // pred_region
    _
  $region13: #{encoder_forward.7} parent=0 // pred_fallthru
    _
  %p14 = scmp.eq.s32.totalorder 0, 0
  // Predicated region
  $region14: #{encoder_forward.7} parent=0 // pred_check
    %p15 = pneg %p14
  $region15: #{encoder_forward.7} parent=0 // pred_check_branch
    %17 = sbr.rel (%p15) target = $region17
  $region16: #{encoder_forward.7} parent=0 // pred_region
    %18 = vst [vmem:[%s3] sm:$0xff] 0.0
    %19 = vst [vmem:[%s3 + $0x8] sm:$0xff] 0.0
    %20 = vst [vmem:[%s3 + $0x10] sm:$0xff] 0.0
    %21 = vst [vmem:[%s3 + $0x18] sm:$0xff] 0.0
    %22 = vst [vmem:[%s3 + $0x20] sm:$0xff] 0.0
    %23 = vst [vmem:[%s3 + $0x28] sm:$0xff] 0.0
    %24 = vst [vmem:[%s3 + $0x30] sm:$0xff] 0.0
    %25 = vst [vmem:[%s3 + $0x38] sm:$0xff] 0.0
    %26 = vst [vmem:[%s3 + $0x40] sm:$0xff] 0.0
    %27 = vst [vmem:[%s3 + $0x48] sm:$0xff] 0.0
    %28 = vst [vmem:[%s3 + $0x50] sm:$0xff] 0.0
    %29 = vst [vmem:[%s3 + $0x58] sm:$0xff] 0.0
    %30 = vst [vmem:[%s3 + $0x60] sm:$0xff] 0.0
    %31 = vst [vmem:[%s3 + $0x68] sm:$0xff] 0.0
    %32 = vst [vmem:[%s3 + $0x70] sm:$0xff] 0.0
    %33 = vst [vmem:[%s3 + $0x78] sm:$0xff] 0.0
  $region17: #{encoder_forward.7} parent=0 // pred_fallthru
    _
  %s34 = smul.u32 0, 128
  %s35 = sshra.s32 %s34, 3
  %s36 = sand.u32 %s34, 7
  %s37 = smul.addr %s35, 4
  %s38 = scalar_lea.vmem %s1, %s37
  %v39 = vld [vmem:[%s38] sm:$0xf]
  %v40 = vld [vmem:[%s38 + $0x4] sm:$0xf]
  %v41 = vld [vmem:[%s38 + $0x8] sm:$0xf]
  %v42 = vld [vmem:[%s38 + $0xc] sm:$0xf]
  %v43 = vld [vmem:[%s38 + $0x10] sm:$0xf]
  %v44 = vld [vmem:[%s38 + $0x14] sm:$0xf]
  %v45 = vld [vmem:[%s38 + $0x18] sm:$0xf]
  %v46 = vld [vmem:[%s38 + $0x1c] sm:$0xf]
  %v47 = vld [vmem:[%s38 + $0x20] sm:$0xf]
  %v48 = vld [vmem:[%s38 + $0x24] sm:$0xf]
  %v49 = vld [vmem:[%s38 + $0x28] sm:$0xf]
  %v50 = vld [vmem:[%s38 + $0x2c] sm:$0xf]
  %v51 = vld [vmem:[%s38 + $0x30] sm:$0xf]
  %v52 = vld [vmem:[%s38 + $0x34] sm:$0xf]
  %v53 = vld [vmem:[%s38 + $0x38] sm:$0xf]
  %v54 = vld [vmem:[%s38 + $0x3c] sm:$0xf]
  %v55 = vld [vmem:[%s3] sm:$0xff]
  %v56 = vld [vmem:[%s3 + $0x8] sm:$0xff]
  %v57 = vld [vmem:[%s3 + $0x10] sm:$0xff]
  %v58 = vld [vmem:[%s3 + $0x18] sm:$0xff]
  %v59 = vld [vmem:[%s3 + $0x20] sm:$0xff]
  %v60 = vld [vmem:[%s3 + $0x28] sm:$0xff]
  %v61 = vld [vmem:[%s3 + $0x30] sm:$0xff]
  %v62 = vld [vmem:[%s3 + $0x38] sm:$0xff]
  %v63 = vld [vmem:[%s3 + $0x40] sm:$0xff]
  %v64 = vld [vmem:[%s3 + $0x48] sm:$0xff]
  %v65 = vld [vmem:[%s3 + $0x50] sm:$0xff]
  %v66 = vld [vmem:[%s3 + $0x58] sm:$0xff]
  %v67 = vld [vmem:[%s3 + $0x60] sm:$0xff]
  %v68 = vld [vmem:[%s3 + $0x68] sm:$0xff]
  %v69 = vld [vmem:[%s3 + $0x70] sm:$0xff]
  %v70 = vld [vmem:[%s3 + $0x78] sm:$0xff]
  %v71 = vld [vmem:[%s0] sm:$0xf]
  %v72 = vld [vmem:[%s0 + $0x4] sm:$0xf]
  %v73 = vld [vmem:[%s0 + $0x8] sm:$0xf]
  %v74 = vld [vmem:[%s0 + $0xc] sm:$0xf]
  %v75 = vld [vmem:[%s0 + $0x10] sm:$0xf]
  %v76 = vld [vmem:[%s0 + $0x14] sm:$0xf]
  %v77 = vld [vmem:[%s0 + $0x18] sm:$0xf]
  %v78 = vld [vmem:[%s0 + $0x1c] sm:$0xf]
  %v79 = vld [vmem:[%s0 + $0x20] sm:$0xf]
  %v80 = vld [vmem:[%s0 + $0x24] sm:$0xf]
  %v81 = vld [vmem:[%s0 + $0x28] sm:$0xf]
  %v82 = vld [vmem:[%s0 + $0x2c] sm:$0xf]
  %v83 = vld [vmem:[%s0 + $0x30] sm:$0xf]
  %v84 = vld [vmem:[%s0 + $0x34] sm:$0xf]
  %v85 = vld [vmem:[%s0 + $0x38] sm:$0xf]
  %v86 = vld [vmem:[%s0 + $0x3c] sm:$0xf]
  %v103 = vunpack.c.l.b16 %v71
  %v104 = vunpack.c.l.b16 %v72
  %v105 = vunpack.c.l.b16 %v73
  %v106 = vunpack.c.l.b16 %v74
  %v107 = vunpack.c.l.b16 %v75
  %v108 = vunpack.c.l.b16 %v76
  %v109 = vunpack.c.l.b16 %v77
  %v110 = vunpack.c.l.b16 %v78
  %v111 = vunpack.c.l.b16 %v79
  %v112 = vunpack.c.l.b16 %v80
  %v113 = vunpack.c.l.b16 %v81
  %v114 = vunpack.c.l.b16 %v82
  %v115 = vunpack.c.l.b16 %v83
  %v116 = vunpack.c.l.b16 %v84
  %v117 = vunpack.c.l.b16 %v85
  %v118 = vunpack.c.l.b16 %v86
  %v119 = vpack.c.b16 %v104, %v103
  %v120 = vpack.c.b16 %v106, %v105
  %v121 = vpack.c.b16 %v108, %v107
  %v122 = vpack.c.b16 %v110, %v109
  %v123 = vpack.c.b16 %v112, %v111
  %v124 = vpack.c.b16 %v114, %v113
  %v125 = vpack.c.b16 %v116, %v115
  %v126 = vpack.c.b16 %v118, %v117
  %v151 = vunpack.c.l.b16 %v39
  %v152 = vunpack.c.l.b16 %v40
  %v153 = vunpack.c.l.b16 %v41
  %v154 = vunpack.c.l.b16 %v42
  %v155 = vunpack.c.l.b16 %v43
  %v156 = vunpack.c.l.b16 %v44
  %v157 = vunpack.c.l.b16 %v45
  %v158 = vunpack.c.l.b16 %v46
  %v159 = vunpack.c.l.b16 %v47
  %v160 = vunpack.c.l.b16 %v48
  %v161 = vunpack.c.l.b16 %v49
  %v162 = vunpack.c.l.b16 %v50
  %v163 = vunpack.c.l.b16 %v51
  %v164 = vunpack.c.l.b16 %v52
  %v165 = vunpack.c.l.b16 %v53
  %v166 = vunpack.c.l.b16 %v54
  %v167 = vpack.c.b16 %v152, %v151
  %v168 = vpack.c.b16 %v154, %v153
  %v169 = vpack.c.b16 %v156, %v155
  %v170 = vpack.c.b16 %v158, %v157
  %v171 = vpack.c.b16 %v160, %v159
  %v172 = vpack.c.b16 %v162, %v161
  %v173 = vpack.c.b16 %v164, %v163
  %v174 = vpack.c.b16 %v166, %v165
  %183 = vmatpush.bf16.msra.mxu0 %v174
  %184 = vmatpush.bf16.msra.mxu0 %v173
  %185 = vmatpush.bf16.msra.mxu0 %v172
  %186 = vmatpush.bf16.msra.mxu0 %v171
  %187 = vmatpush.bf16.msra.mxu0 %v170
  %188 = vmatpush.bf16.msra.mxu0 %v169
  %189 = vmatpush.bf16.msra.mxu0 %v168
  %190 = vmatpush.bf16.msra.mxu0 %v167
  %191 = vmatmul.bf16.gmra.mxu0 %v119
  %v192 = vpop.f32.mrf.mxu0
  %v193 = vadd.f32 0.0, %v192
  %v194 = vpop.f32.mrf.mxu0
  %v195 = vadd.f32 0.0, %v194
  %196 = vmatmul.bf16.gmra.mxu0 %v120
  %v197 = vpop.f32.mrf.mxu0
  %v198 = vadd.f32 0.0, %v197
  %v199 = vpop.f32.mrf.mxu0
  %v200 = vadd.f32 0.0, %v199
  %201 = vmatmul.bf16.gmra.mxu0 %v121
  %v202 = vpop.f32.mrf.mxu0
  %v203 = vadd.f32 0.0, %v202
  %v204 = vpop.f32.mrf.mxu0
  %v205 = vadd.f32 0.0, %v204
  %206 = vmatmul.bf16.gmra.mxu0 %v122
  %v207 = vpop.f32.mrf.mxu0
  %v208 = vadd.f32 0.0, %v207
  %v209 = vpop.f32.mrf.mxu0
  %v210 = vadd.f32 0.0, %v209
  %211 = vmatmul.bf16.gmra.mxu0 %v123
  %v212 = vpop.f32.mrf.mxu0
  %v213 = vadd.f32 0.0, %v212
  %v214 = vpop.f32.mrf.mxu0
  %v215 = vadd.f32 0.0, %v214
  %216 = vmatmul.bf16.gmra.mxu0 %v124
  %v217 = vpop.f32.mrf.mxu0
  %v218 = vadd.f32 0.0, %v217
  %v219 = vpop.f32.mrf.mxu0
  %v220 = vadd.f32 0.0, %v219
  %221 = vmatmul.bf16.gmra.mxu0 %v125
  %v222 = vpop.f32.mrf.mxu0
  %v223 = vadd.f32 0.0, %v222
  %v224 = vpop.f32.mrf.mxu0
  %v225 = vadd.f32 0.0, %v224
  %226 = vmatmul.bf16.gmra.mxu0 %v126
  %v227 = vpop.f32.mrf.mxu0
  %v228 = vadd.f32 0.0, %v227
  %v229 = vpop.f32.mrf.mxu0
  %v230 = vadd.f32 0.0, %v229
  %231 = vdwg.mxu0
  %v232 = vadd.f32 %v55, %v193
  %v233 = vadd.f32 %v56, %v195
  %v234 = vadd.f32 %v57, %v198
  %v235 = vadd.f32 %v58, %v200
  %v236 = vadd.f32 %v59, %v203
  %v237 = vadd.f32 %v60, %v205
  %v238 = vadd.f32 %v61, %v208
  %v239 = vadd.f32 %v62, %v210
  %v240 = vadd.f32 %v63, %v213
  %v241 = vadd.f32 %v64, %v215
  %v242 = vadd.f32 %v65, %v218
  %v243 = vadd.f32 %v66, %v220
  %v244 = vadd.f32 %v67, %v223
  %v245 = vadd.f32 %v68, %v225
  %v246 = vadd.f32 %v69, %v228
  %v247 = vadd.f32 %v70, %v230
  %248 = vst [vmem:[%s3] sm:$0xff] %v232
  %249 = vst [vmem:[%s3 + $0x8] sm:$0xff] %v233
  %250 = vst [vmem:[%s3 + $0x10] sm:$0xff] %v234
  %251 = vst [vmem:[%s3 + $0x18] sm:$0xff] %v235
  %252 = vst [vmem:[%s3 + $0x20] sm:$0xff] %v236
  %253 = vst [vmem:[%s3 + $0x28] sm:$0xff] %v237
  %254 = vst [vmem:[%s3 + $0x30] sm:$0xff] %v238
  %255 = vst [vmem:[%s3 + $0x38] sm:$0xff] %v239
  %256 = vst [vmem:[%s3 + $0x40] sm:$0xff] %v240
  %257 = vst [vmem:[%s3 + $0x48] sm:$0xff] %v241
  %258 = vst [vmem:[%s3 + $0x50] sm:$0xff] %v242
  %259 = vst [vmem:[%s3 + $0x58] sm:$0xff] %v243
  %260 = vst [vmem:[%s3 + $0x60] sm:$0xff] %v244
  %261 = vst [vmem:[%s3 + $0x68] sm:$0xff] %v245
  %262 = vst [vmem:[%s3 + $0x70] sm:$0xff] %v246
  %263 = vst [vmem:[%s3 + $0x78] sm:$0xff] %v247
  // Predicated region
  $region18: #{encoder_forward.7} parent=0 // pred_check
    %p264 = pneg %p14
  $region19: #{encoder_forward.7} parent=0 // pred_check_branch
    %266 = sbr.rel (%p264) target = $region21
  $region20: #{encoder_forward.7} parent=0 // pred_region
    %v267 = vld [vmem:[%s3] sm:$0xff]
    %v268 = vld [vmem:[%s3 + $0x8] sm:$0xff]
    %v269 = vld [vmem:[%s3 + $0x10] sm:$0xff]
    %v270 = vld [vmem:[%s3 + $0x18] sm:$0xff]
    %v271 = vld [vmem:[%s3 + $0x20] sm:$0xff]
    %v272 = vld [vmem:[%s3 + $0x28] sm:$0xff]
    %v273 = vld [vmem:[%s3 + $0x30] sm:$0xff]
    %v274 = vld [vmem:[%s3 + $0x38] sm:$0xff]
    %v275 = vld [vmem:[%s3 + $0x40] sm:$0xff]
    %v276 = vld [vmem:[%s3 + $0x48] sm:$0xff]
    %v277 = vld [vmem:[%s3 + $0x50] sm:$0xff]
    %v278 = vld [vmem:[%s3 + $0x58] sm:$0xff]
    %v279 = vld [vmem:[%s3 + $0x60] sm:$0xff]
    %v280 = vld [vmem:[%s3 + $0x68] sm:$0xff]
    %v281 = vld [vmem:[%s3 + $0x70] sm:$0xff]
    %v282 = vld [vmem:[%s3 + $0x78] sm:$0xff]
    %v283 = vld [vmem:[%s2] sm:$0x1]
    %v285 = vperm.slane %v283, 0
    %v287 = vadd.f32 %v267, %v285
    %v288 = vadd.f32 %v268, %v285
    %v289 = vadd.f32 %v269, %v285
    %v290 = vadd.f32 %v270, %v285
    %v291 = vadd.f32 %v271, %v285
    %v292 = vadd.f32 %v272, %v285
    %v293 = vadd.f32 %v273, %v285
    %v294 = vadd.f32 %v274, %v285
    %v295 = vadd.f32 %v275, %v285
    %v296 = vadd.f32 %v276, %v285
    %v297 = vadd.f32 %v277, %v285
    %v298 = vadd.f32 %v278, %v285
    %v299 = vadd.f32 %v279, %v285
    %v300 = vadd.f32 %v280, %v285
    %v301 = vadd.f32 %v281, %v285
    %v302 = vadd.f32 %v282, %v285
    %v303 = vmax.f32 %v287, 0.0
    %v304 = vmax.f32 %v288, 0.0
    %v305 = vmax.f32 %v289, 0.0
    %v306 = vmax.f32 %v290, 0.0
    %v307 = vmax.f32 %v291, 0.0
    %v308 = vmax.f32 %v292, 0.0
    %v309 = vmax.f32 %v293, 0.0
    %v310 = vmax.f32 %v294, 0.0
    %v311 = vmax.f32 %v295, 0.0
    %v312 = vmax.f32 %v296, 0.0
    %v313 = vmax.f32 %v297, 0.0
    %v314 = vmax.f32 %v298, 0.0
    %v315 = vmax.f32 %v299, 0.0
    %v316 = vmax.f32 %v300, 0.0
    %v317 = vmax.f32 %v301, 0.0
    %v318 = vmax.f32 %v302, 0.0
    %319 = vst [vmem:[%s3] sm:$0xff] %v303
    %320 = vst [vmem:[%s3 + $0x8] sm:$0xff] %v304
    %321 = vst [vmem:[%s3 + $0x10] sm:$0xff] %v305
    %322 = vst [vmem:[%s3 + $0x18] sm:$0xff] %v306
    %323 = vst [vmem:[%s3 + $0x20] sm:$0xff] %v307
    %324 = vst [vmem:[%s3 + $0x28] sm:$0xff] %v308
    %325 = vst [vmem:[%s3 + $0x30] sm:$0xff] %v309
    %326 = vst [vmem:[%s3 + $0x38] sm:$0xff] %v310
    %327 = vst [vmem:[%s3 + $0x40] sm:$0xff] %v311
    %328 = vst [vmem:[%s3 + $0x48] sm:$0xff] %v312
    %329 = vst [vmem:[%s3 + $0x50] sm:$0xff] %v313
    %330 = vst [vmem:[%s3 + $0x58] sm:$0xff] %v314
    %331 = vst [vmem:[%s3 + $0x60] sm:$0xff] %v315
    %332 = vst [vmem:[%s3 + $0x68] sm:$0xff] %v316
    %333 = vst [vmem:[%s3 + $0x70] sm:$0xff] %v317
    %334 = vst [vmem:[%s3 + $0x78] sm:$0xff] %v318
  $region21: #{encoder_forward.7} parent=0 // pred_fallthru
    _
  // Predicated region
  $region22: #{encoder_forward.7} parent=0 // pred_check
    _
  $region23: #{encoder_forward.7} parent=0 // pred_check_branch
    %336 = sbr.rel (0) target = $region25
  $region24: #{encoder_forward.7} parent=0 // pred_region
    _
  $region25: #{encoder_forward.7} parent=0 // pred_fallthru
    _
  // Predicated region
  $region26: #{encoder_forward.7} parent=0 // pred_check
    _
  $region27: #{encoder_forward.7} parent=0 // pred_check_branch
    %338 = sbr.rel (0) target = $region29
  $region28: #{encoder_forward.7} parent=0 // pred_region
    _
  $region29: #{encoder_forward.7} parent=0 // pred_fallthru
    _

</llo_original>
